<compile_context>
chip_gen: v6e
topology: v6e:2x2x1
jax: 0.10.0
libtpu: 0.0.40
codegen_flags: <defaults>
</compile_context>

<pallas_src>
import functools

import jax
import jax.numpy as jnp
from jax.experimental import pallas as pl
from jax.experimental.pallas import tpu as pltpu

_PAIRWISE_EPS = 1e-6  # torch F.pairwise_distance default eps (added to the difference)


def _contrastive_kernel(x_ref, lbl_ref, out_ref, *,
                        margin: float, total_rows: int, tile_rows: int):
    """One (tile_rows, D) slab of the batch -> one scalar partial sum.

    x_ref:   (2, tile_rows, D) in the input dtype (both halves, single DMA stream)
    lbl_ref: (tile_rows, 1) f32
    out_ref: (1, 1, 1) f32 per-tile partial sum (parallel grid axis, no shared accumulator)
    """
    # Cast in-kernel so narrow dtypes (e.g. bf16) are DMA'd narrow but the
    # subtract / square / reduce run in f32.
    x1 = x_ref[0].astype(jnp.float32)
    x2 = x_ref[1].astype(jnp.float32)
    lbl = lbl_ref[...].astype(jnp.float32)

    diff = x1 - x2 + _PAIRWISE_EPS                              # (TB, D)
    sq_dist = jnp.sum(diff * diff, axis=-1, keepdims=True)      # (TB, 1) == d^2
    dist = jnp.sqrt(sq_dist)                                    # (TB, 1)
    hinge = jnp.maximum(margin - dist, 0.0)
    per_row = (1.0 - lbl) * sq_dist + lbl * hinge * hinge       # (TB, 1)

    if total_rows % tile_rows != 0:
        # Ragged last tile: mask the cheap (TB, 1) column, not the (TB, D) slab.
        # Must stay a jnp.where (not a multiply) so NaN/Inf/garbage from padded
        # rows is discarded instead of poisoning the sum.
        row = (pl.program_id(0) * tile_rows
               + jax.lax.broadcasted_iota(jnp.int32, (tile_rows, 1), 0))
        per_row = jnp.where(row < total_rows, per_row, 0.0)

    out_ref[...] = jnp.sum(per_row).reshape(1, 1, 1)            # this tile's partial sum


def _vmem_budgets() -> tuple[int, int]:
    """Returns (per-tile byte budget, vmem_limit_bytes), generation aware."""
    try:
        cap = int(pltpu.get_tpu_info().vmem_capacity_bytes)
    except Exception:
        cap = 128 * 1024 * 1024
    if cap >= 128 * 1024 * 1024:
        # v5e / v6e: 128 MiB physical VMEM -> raise the scoped limit, tile big.
        return 32 * 1024 * 1024, 64 * 1024 * 1024
    # v7x: 64 MiB physical per TensorCore -> keep total scoped usage <= ~48 MiB.
    return 20 * 1024 * 1024, 48 * 1024 * 1024


def _pick_tile_rows(batch: int, feat: int, itemsize: int,
                    tile_budget_bytes: int) -> int:
    # Per batch row:
    #   DMA side: both halves x 2 pipeline buffers at the input width,
    #   compute side: ~4 f32 temporaries (x1/x2 casts, diff, diff^2).
    dma_bytes = 2 * 2 * feat * max(itemsize, 1)
    f32_temp_bytes = 4 * feat * 4
    bytes_per_row = dma_bytes + f32_temp_bytes
    tb = tile_budget_bytes // max(bytes_per_row, 1)
    if tb >= batch:
        return batch                      # whole batch in one tile (full-dim block is always legal)
    return max(8, (int(tb) // 8) * 8)     # sublane-aligned tile, no artificial row cap


def contrastive_loss(outputs: jax.Array, label: jax.Array, margin,
                     *, tile_rows: int | None = None) -> jax.Array:
    """outputs: (2, B, D); label: (B, 1) (or broadcastable). Returns scalar f32."""
    if outputs.shape[0] != 2:
        raise ValueError(
            "This is the Contrastive Loss but more (or less) than 2 tensors were unpacked"
        )
    _, B, D = outputs.shape
    # Label is tiny (B floats); casting/reshaping it in the wrapper is negligible.
    lbl = jnp.broadcast_to(jnp.asarray(label, jnp.float32).reshape(-1, 1), (B, 1))

    tile_budget, vmem_limit = _vmem_budgets()
    tb = tile_rows if tile_rows is not None else _pick_tile_rows(
        B, D, outputs.dtype.itemsize, tile_budget)
    tb = min(tb, B)
    num_tiles = pl.cdiv(B, tb)

    kernel = functools.partial(
        _contrastive_kernel, margin=float(margin), total_rows=B, tile_rows=tb)

    partial_sums = pl.pallas_call(
        kernel,
        out_shape=jax.ShapeDtypeStruct((num_tiles, 1, 1), jnp.float32),
        grid=(num_tiles,),
        in_specs=[
            # Both halves in one stream: outputs[:, i*tb:(i+1)*tb, :]
            pl.BlockSpec((2, tb, D), lambda i: (0, i, 0)),
            # label tile
            pl.BlockSpec((tb, 1), lambda i: (i, 0)),
        ],
        # Each grid step owns its own (1,1,1) partial-sum block -> safe to mark parallel.
        out_specs=pl.BlockSpec((1, 1, 1), lambda i: (i, 0, 0)),
        compiler_params=pltpu.CompilerParams(
            dimension_semantics=("parallel",),      # batch tiles are independent (2 TCs on v7x)
            vmem_limit_bytes=vmem_limit,
        ),
    )(outputs, lbl)

    # Tiny trailing reduction (num_tiles scalars) + mean over the true B.
    return jnp.sum(partial_sums) / B


def _reference(outputs, label, margin):
    x1 = outputs[0].astype(jnp.float32)
    x2 = outputs[1].astype(jnp.float32)
    d = jnp.sqrt(jnp.sum((x1 - x2 + _PAIRWISE_EPS) ** 2, axis=-1, keepdims=True))
    lbl = jnp.asarray(label, jnp.float32).reshape(-1, 1)
    return jnp.mean((1.0 - lbl) * d ** 2
                    + lbl * jnp.maximum(margin - d, 0.0) ** 2)


if __name__ == "__main__":
    key = jax.random.PRNGKey(0)
    k1, k2, k3, k4, k5, k6 = jax.random.split(key, 6)
    margin = 2.0

    # Case 1: small demo shape, whole batch in one tile (single grid step).
    B, D = 8, 32
    outputs = jax.random.normal(k1, (2, B, D), dtype=jnp.float32)
    label = jax.random.bernoulli(k2, 0.5, (B, 1)).astype(jnp.float32)
    loss = contrastive_loss(outputs, label, margin)
    jax.block_until_ready(loss)
    ref = _reference(outputs, label, margin)
    assert jnp.allclose(loss, ref, rtol=1e-5, atol=1e-5), (loss, ref)

    # Case 2: multi-tile, B divisible by the tile -> pure parallel partial sums.
    B2, D2, tb2 = 24, 32, 8
    outputs2 = jax.random.normal(k3, (2, B2, D2), dtype=jnp.float32)
    label2 = jax.random.bernoulli(k4, 0.5, (B2, 1)).astype(jnp.float32)
    loss2 = contrastive_loss(outputs2, label2, margin, tile_rows=tb2)
    jax.block_until_ready(loss2)
    ref2 = _reference(outputs2, label2, margin)
    assert jnp.allclose(loss2, ref2, rtol=1e-5, atol=1e-5), (loss2, ref2)

    # Case 3: ragged last tile (per_row masking path) + bf16 inputs (in-kernel cast).
    B3, D3, tb3 = 20, 32, 8
    outputs3 = jax.random.normal(k5, (2, B3, D3), dtype=jnp.bfloat16)
    label3 = jax.random.bernoulli(k6, 0.5, (B3, 1)).astype(jnp.float32)
    loss3 = contrastive_loss(outputs3, label3, margin, tile_rows=tb3)
    jax.block_until_ready(loss3)
    ref3 = _reference(outputs3, label3, margin)
    assert jnp.allclose(loss3, ref3, rtol=1e-4, atol=1e-4), (loss3, ref3)

    print("KERNEL_OK")
</pallas_src>

<mosaic_0001>
module attributes {stable_mosaic.version = 11 : i64} {
  func.func @_contrastive_kernel(%arg0: i32, %arg1: memref<2x8x32xf32, #tpu.memory_space<vmem>>, %arg2: memref<8x1xf32, #tpu.memory_space<vmem>>, %arg3: memref<1x1x1xf32, #tpu.memory_space<vmem>>) attributes {dimension_semantics = [#tpu.dimension_semantics<parallel>], iteration_bounds = array<i64: 1>, scalar_prefetch = 0 : i64, scratch_operands = 0 : i64, tpu.core_type = #tpu.core_type<tc>, window_params = [{transform_indices = @transform_0, window_bounds = array<i64: 2, 8, 32>}, {transform_indices = @transform_1, window_bounds = array<i64: 8, 1>}, {transform_indices = @transform_2, window_bounds = array<i64: 1, 1, 1>}]} {
    %c0 = arith.constant 0 : index
    %c0_0 = arith.constant 0 : index
    %c0_1 = arith.constant 0 : index
    %0 = vector.load %arg1[%c0, %c0_0, %c0_1] : memref<2x8x32xf32, #tpu.memory_space<vmem>>, vector<1x8x32xf32>
    %1 = vector.shape_cast %0 : vector<1x8x32xf32> to vector<8x32xf32>
    %c1 = arith.constant 1 : index
    %c0_2 = arith.constant 0 : index
    %c0_3 = arith.constant 0 : index
    %2 = vector.load %arg1[%c1, %c0_2, %c0_3] : memref<2x8x32xf32, #tpu.memory_space<vmem>>, vector<1x8x32xf32>
    %3 = vector.shape_cast %2 : vector<1x8x32xf32> to vector<8x32xf32>
    %c0_4 = arith.constant 0 : index
    %c0_5 = arith.constant 0 : index
    %4 = vector.load %arg2[%c0_4, %c0_5] : memref<8x1xf32, #tpu.memory_space<vmem>>, vector<8x1xf32>
    %5 = arith.subf %1, %3 : vector<8x32xf32>
    %cst = arith.constant 9.99999997E-7 : f32
    %6 = vector.broadcast %cst : f32 to vector<8x32xf32>
    %7 = arith.addf %5, %6 : vector<8x32xf32>
    %8 = arith.mulf %7, %7 : vector<8x32xf32>
    %cst_6 = arith.constant dense<0.000000e+00> : vector<8xf32>
    %9 = vector.multi_reduction <add>, %8, %cst_6 [1] : vector<8x32xf32> to vector<8xf32>
    %10 = vector.shape_cast %9 : vector<8xf32> to vector<8x1xf32>
    %11 = math.sqrt %10 : vector<8x1xf32>
    %cst_7 = arith.constant 2.000000e+00 : f32
    %12 = vector.broadcast %cst_7 : f32 to vector<8x1xf32>
    %13 = arith.subf %12, %11 : vector<8x1xf32>
    %cst_8 = arith.constant 0.000000e+00 : f32
    %14 = vector.broadcast %cst_8 : f32 to vector<8x1xf32>
    %15 = arith.maximumf %13, %14 : vector<8x1xf32>
    %cst_9 = arith.constant 1.000000e+00 : f32
    %16 = vector.broadcast %cst_9 : f32 to vector<8x1xf32>
    %17 = arith.subf %16, %4 : vector<8x1xf32>
    %18 = arith.mulf %17, %10 : vector<8x1xf32>
    %19 = arith.mulf %4, %15 : vector<8x1xf32>
    %20 = arith.mulf %19, %15 : vector<8x1xf32>
    %21 = arith.addf %18, %20 : vector<8x1xf32>
    %22 = vector.shape_cast %21 : vector<8x1xf32> to vector<1x8x1xf32>
    %cst_10 = arith.constant dense<0.000000e+00> : vector<1xf32>
    %23 = vector.multi_reduction <add>, %22, %cst_10 [1, 2] : vector<1x8x1xf32> to vector<1xf32>
    %24 = vector.shape_cast %23 : vector<1xf32> to vector<1x1x1xf32>
    %25 = vector.extract %24[0, 0, 0] : f32 from vector<1x1x1xf32>
    %26 = vector.broadcast %25 : f32 to vector<1x1x1xf32>
    %c0_11 = arith.constant 0 : index
    %c0_12 = arith.constant 0 : index
    %c0_13 = arith.constant 0 : index
    %27 = vector.load %arg3[%c0_11, %c0_12, %c0_13] : memref<1x1x1xf32, #tpu.memory_space<vmem>>, vector<1x1x1xf32>
    tpu.vector_store %arg3[%c0_11, %c0_12, %c0_13], %26 {strides = array<i32>} : memref<1x1x1xf32, #tpu.memory_space<vmem>>, vector<1x1x1xf32>,
    return
  }
  func.func @transform_0(%arg0: i32) -> (i32, i32, i32) {
    %c0_i32 = arith.constant 0 : i32
    %c0_i32_0 = arith.constant 0 : i32
    %c0_i32_1 = arith.constant 0 : i32
    return %c0_i32, %arg0, %c0_i32_0 : i32, i32, i32
  }
  func.func @transform_1(%arg0: i32) -> (i32, i32) {
    %c0_i32 = arith.constant 0 : i32
    %c0_i32_0 = arith.constant 0 : i32
    return %arg0, %c0_i32 : i32, i32
  }
  func.func @transform_2(%arg0: i32) -> (i32, i32, i32) {
    %c0_i32 = arith.constant 0 : i32
    %c0_i32_0 = arith.constant 0 : i32
    %c0_i32_1 = arith.constant 0 : i32
    return %arg0, %c0_i32, %c0_i32_0 : i32, i32, i32
  }
}

</mosaic_0001>

<llo_original>
// kernel: tpu_custom_call.1
$region0: #{tpu_custom_call.1}
  #allocation0 [shape = 'u32[]', space=smem, size = 0x4, offset = 0x4, fixed_abs, tag = 'smem constant byte address 0x4 - core index']
  #allocation1 [shape = 'u32[144,128]{1,0:T(1,128)}', space=vmem, size = 0x12000, scoped, tag = 'internal scratch']
  %s0 = inlined_call_operand.hbm [shape: f32[2,8,32], index: 0, kind: input, shape index: {}]
  %s1 = inlined_call_operand.vmem [shape: f32[8,1], index: 1, kind: input, shape index: {}]
  %s2 = inlined_call_operand.hbm [shape: f32[1,1,1], index: 2, kind: output, shape index: {}]
  %s3 = sld [smem:[#allocation0]]
  $region22: #{tpu_custom_call.1} parent=0
    _
  %s5 = ssub.s32 1, %s3
  %s6 = scalar_select 0, %s5, %s3
  $region1: #{tpu_custom_call.1} parent=0
    #allocation2 [shape = 'u8[8192]{0}', space=vmem, size = 0x2000, scoped, tag = 'input window, operand 0, single buffered']
    #allocation3 [shape = 's32[1]{0}', space=sflag, size = 0x4, scoped, tag = 'scoped memory for tpu_custom_call.1']
    #allocation4 [shape = 's32[1]{0}', space=sflag, size = 0x4, scoped, tag = 'scoped memory for tpu_custom_call.1']
    #allocation5 [shape = 'u8[512]{0}', space=vmem, size = 0x400, scoped, tag = 'output window, operand 0, single buffered']
    %7 = vsyncpa [#allocation3], 0
    %8 = vsyncpa [#allocation4], 0
    // Predicated region
    $region2: #{tpu_custom_call.1} parent=1 // pred_check
      _
    $region3: #{tpu_custom_call.1} parent=1 // pred_check_branch
      %10 = sbr.rel (0) target = $region5
    $region4: #{tpu_custom_call.1} parent=1 // pred_region
      %s12 = ssub.s32 256, 256
      %13 = vsyncadd [#allocation3], %s12
      %s14 = sshll.u32 [#allocation2], 4
      %s15 = int_to_ptr.vmem [resolvable:$true] %s14
      %20 = dma.hbm_to_vmem [thread:$0]  %s0, 256, %s15, [#allocation3], 128, 128, 8
    $region5: #{tpu_custom_call.1} parent=1 // pred_fallthru
      _
    // Predicated region
    $region6: #{tpu_custom_call.1} parent=1 // pred_check
      _
    $region7: #{tpu_custom_call.1} parent=1 // pred_check_branch
      %22 = sbr.rel (0) target = $region9
    $region8: #{tpu_custom_call.1} parent=1 // pred_region
      _
    $region9: #{tpu_custom_call.1} parent=1 // pred_fallthru
      _
    // Predicated region
    $region10: #{tpu_custom_call.1} parent=1 // pred_check
      _
    $region11: #{tpu_custom_call.1} parent=1 // pred_check_branch
      %24 = sbr.rel (0) target = $region13
    $region12: #{tpu_custom_call.1} parent=1 // pred_region
      %25 = dma.done [#allocation3], 256
    $region13: #{tpu_custom_call.1} parent=1 // pred_fallthru
      _
    %v26 = vld [vmem:[#allocation2] sm:$0xff]
    %s27 = scalar_lea.vmem [#allocation2], 8
    %v28 = vld [vmem:[%s27] sm:$0xff]
    %v29 = vld [vmem:[%s1] sm:$0xff]
    %v30 = vsub.f32 %v26, %v28
    %v31 = vadd.f32 %v30, 1e-06
    %v32 = vmul.f32 %v31, %v31
    %vm33 = vcmask 261120
    %v34 = vsel %vm33, %v32, 0.0
    %35 = vadd.xlane.f32.xlu0 %v34
    %v36 = vpop.xlane.xlu0 %35
    %v37 = vrsqrt.pop %v36
    %v38 = vmul.f32 %v36, %v37
    %vm39 = vcmp.eq.f32.partialorder %v36, inf
    %v40 = vsel %vm39, %v36, %v38
    %vm41 = vcmp.eq.f32.partialorder %v36, 0.0
    %v42 = vand.u32 %v36, 2147483648
    %v43 = vsel %vm41, %v42, %v40
    %v44 = vsub.f32 2.0, %v43
    %v45 = vmax.f32 %v44, 0.0
    %v46 = vsub.f32 1.0, %v29
    %v47 = vmul.f32 %v46, %v36
    %v48 = vmul.f32 %v29, %v45
    %v49 = vmul.f32 %v48, %v45
    %v50 = vadd.f32 %v47, %v49
    %vm51 = vcmask 7168
    %v52 = vsel %vm51, %v50, 0.0
    %53 = vadd.xlane.f32.xlu0 %v52
    %v54 = vpop.xlane.xlu0 %53
    %v55 = vrot.slane %v54, 4
    %v56 = vadd.f32 %v54, %v55
    %v57 = vrot.slane %v56, 2
    %v58 = vadd.f32 %v56, %v57
    %v59 = vrot.slane %v58, 1
    %v60 = vadd.f32 %v58, %v59
    %s61 = vtos %v60
    %v62 = vstv %s61
    %vm63 = vcmask 0
    %64 = vst.msk [vmem:[#allocation5] sm:$0x1] %vm63, %v62
    // Predicated region
    $region14: #{tpu_custom_call.1} parent=1 // pred_check
      _
    $region15: #{tpu_custom_call.1} parent=1 // pred_check_branch
      %66 = sbr.rel (0) target = $region17
    $region16: #{tpu_custom_call.1} parent=1 // pred_region
      %s68 = ssub.s32 16, 16
      %69 = vsyncadd [#allocation4], %s68
      %s71 = sshll.u32 [#allocation5], 4
      %s72 = int_to_ptr.vmem [resolvable:$true] %s71
      %74 = dma.vmem_to_hbm [thread:$0]  %s72, 16, %s2, [#allocation4]
    $region17: #{tpu_custom_call.1} parent=1 // pred_fallthru
      _
    // Predicated region
    $region18: #{tpu_custom_call.1} parent=1 // pred_check
      _
    $region19: #{tpu_custom_call.1} parent=1 // pred_check_branch
      %76 = sbr.rel (0) target = $region21
    $region20: #{tpu_custom_call.1} parent=1 // pred_region
      %77 = dma.done [#allocation4], 16
    $region21: #{tpu_custom_call.1} parent=1 // pred_fallthru
      _
    %78 = vsyncpa [#allocation3], 1
    %79 = vsyncpa [#allocation4], 1

</llo_original>
